<compile_context>
chip_gen: v5e
topology: v5e:2x2
jax: 0.10.0
libtpu: 0.0.40
codegen_flags: <defaults>
</compile_context>

<pallas_src>
import functools

import jax
import jax.numpy as jnp
from jax import lax
from jax.experimental import pallas as pl
from jax.experimental.pallas import tpu as pltpu


def _round_up(x, m):
    return (x + m - 1) // m * m


def _round_down(x, m):
    return (x // m) * m


def _sublane_multiple(dtype):
    # Minimum sublane tile: 8 rows for 4-byte, 16 for 2-byte, 32 for 1-byte dtypes.
    return max(8, 32 // jnp.dtype(dtype).itemsize)


def _layernorm_kernel(x_ref, gamma_ref, beta_ref, o_ref, *, eps):
    """LayerNorm over the last (lane) dim of one (rows_tile, dim) block."""
    x = x_ref[...].astype(jnp.float32)                     # (rows_tile, dim)
    mean = jnp.mean(x, axis=-1, keepdims=True)             # XLU reduce
    xc = x - mean
    var = jnp.mean(xc * xc, axis=-1, keepdims=True)
    inv = lax.rsqrt(var + eps)                             # EUP
    y = xc * inv
    # gamma/beta arrive pre-cast to f32 as (1, dim) rows; VPU broadcast.
    o_ref[...] = (y * gamma_ref[...] + beta_ref[...]).astype(o_ref.dtype)


def layer_norm_pallas(x, gamma, beta, *, eps=1e-5, max_block_rows=1024,
                      vmem_budget_bytes=24 * 1024 * 1024):
    """LayerNorm(x) over the last dim via a row-tiled Pallas kernel.

    x: (..., dim); gamma/beta: (dim,).  Returns same shape/dtype as x.
    `eps` must be a Python float (it is baked in at trace time).
    """
    orig_shape = x.shape
    dim = orig_shape[-1]
    x2 = x.reshape(-1, dim)
    rows = x2.shape[0]
    itemsize = jnp.dtype(x.dtype).itemsize
    sub = _sublane_multiple(x.dtype)

    # ---- tile selection (dtype- and VMEM-aware, no host-side padding) ----
    if rows <= sub:
        # Single full-extent block; (rows, dim) equals the array dims so the
        # (8,128)-divisibility rule does not apply.
        br = rows
    else:
        # Double-buffered input + output footprint: 4 * br * dim * itemsize.
        br = min(max_block_rows,
                 max(sub, vmem_budget_bytes // (4 * dim * itemsize)))
        # Ensure >= 2 grid steps so the "parallel" axis can shard rows across
        # both v7x TensorCores (harmless on single-TC v5e/v6e).
        br = min(br, _round_up(pl.cdiv(rows, 2), sub))
        br = max(sub, _round_down(br, sub))

    grid = (pl.cdiv(rows, br),)   # partial last block handled by Pallas

    gamma2 = gamma.astype(jnp.float32).reshape(1, dim)
    beta2 = beta.astype(jnp.float32).reshape(1, dim)

    footprint = 4 * br * dim * itemsize + 4 * 2 * dim * 4   # x/out dbl-buf + gamma/beta
    vmem_limit = int(min(64 * 2**20, max(32 * 2**20, footprint + footprint // 4)))

    cost = pl.CostEstimate(
        flops=9 * rows * dim,
        transcendentals=rows,
        bytes_accessed=2 * rows * dim * itemsize + 2 * dim * 4,
    )

    out = pl.pallas_call(
        functools.partial(_layernorm_kernel, eps=float(eps)),
        out_shape=jax.ShapeDtypeStruct((rows, dim), x.dtype),
        grid_spec=pltpu.PrefetchScalarGridSpec(
            num_scalar_prefetch=0,
            grid=grid,
            in_specs=[
                pl.BlockSpec((br, dim), lambda i: (i, 0)),   # x rows tile
                pl.BlockSpec((1, dim), lambda i: (0, 0)),    # gamma (resident)
                pl.BlockSpec((1, dim), lambda i: (0, 0)),    # beta  (resident)
            ],
            out_specs=pl.BlockSpec((br, dim), lambda i: (i, 0)),
        ),
        compiler_params=pltpu.CompilerParams(
            dimension_semantics=("parallel",),
            vmem_limit_bytes=vmem_limit,
        ),
        cost_estimate=cost,
    )(x2, gamma2, beta2)

    return out.reshape(orig_shape)


def prenorm_forward(params, x, fn, **kwargs):
    """PreNorm.forward: fn(LayerNorm(x), **kwargs)."""
    y = layer_norm_pallas(x, params["gamma"], params["beta"], eps=params["eps"])
    return fn(y, **kwargs)


# --------------------------------------------------------------------------
# pure-JAX reference (for correctness checking)
# --------------------------------------------------------------------------
def layer_norm_ref(x, gamma, beta, eps=1e-5):
    xf = x.astype(jnp.float32)
    mean = jnp.mean(xf, axis=-1, keepdims=True)
    var = jnp.mean((xf - mean) ** 2, axis=-1, keepdims=True)
    y = (xf - mean) * lax.rsqrt(var + eps)
    return (y * gamma + beta).astype(x.dtype)


if __name__ == "__main__":
    key = jax.random.PRNGKey(0)

    # small shapes consistent with PreNorm usage in a transformer block
    batch, seq, dim, ff_hidden = 2, 16, 128, 256

    key, kx, kg, kb, kw1, kw2, kx2 = jax.random.split(key, 7)
    x = jax.random.normal(kx, (batch, seq, dim), jnp.float32)
    params = {
        "gamma": 1.0 + 0.1 * jax.random.normal(kg, (dim,), jnp.float32),
        "beta": 0.1 * jax.random.normal(kb, (dim,), jnp.float32),
        "eps": 1e-5,
    }

    # example wrapped `fn`: a GELU feed-forward (arbitrary sub-module in spec)
    w1 = 0.02 * jax.random.normal(kw1, (dim, ff_hidden), jnp.float32)
    w2 = 0.02 * jax.random.normal(kw2, (ff_hidden, dim), jnp.float32)

    def ff_fn(y):
        return jax.nn.gelu(y @ w1) @ w2

    # Pallas-backed PreNorm
    out = prenorm_forward(params, x, ff_fn)
    out = jax.block_until_ready(out)
    assert out.shape == (batch, seq, dim), out.shape

    # correctness: LayerNorm kernel vs reference, and full PreNorm vs reference
    ln_pl = jax.block_until_ready(
        layer_norm_pallas(x, params["gamma"], params["beta"], eps=params["eps"]))
    ln_ref = layer_norm_ref(x, params["gamma"], params["beta"], eps=params["eps"])
    assert jnp.allclose(ln_pl, ln_ref, atol=1e-5, rtol=1e-5), (
        "layernorm max abs diff %e" % float(jnp.max(jnp.abs(ln_pl - ln_ref))))

    out_ref = ff_fn(ln_ref)
    assert jnp.allclose(out, out_ref, atol=1e-4, rtol=1e-4), (
        "prenorm max abs diff %e" % float(jnp.max(jnp.abs(out - out_ref))))

    # also exercise the partial-last-block path (row count not divisible by tile)
    x_odd = jax.random.normal(kx2, (33, dim), jnp.float32)
    ln_odd = jax.block_until_ready(
        layer_norm_pallas(x_odd, params["gamma"], params["beta"], eps=params["eps"]))
    ln_odd_ref = layer_norm_ref(x_odd, params["gamma"], params["beta"], eps=params["eps"])
    assert jnp.allclose(ln_odd, ln_odd_ref, atol=1e-5, rtol=1e-5), (
        "odd-rows layernorm max abs diff %e"
        % float(jnp.max(jnp.abs(ln_odd - ln_odd_ref))))

    print("KERNEL_OK")
</pallas_src>

<mosaic_0001>
module attributes {stable_mosaic.version = 11 : i64} {
  func.func @_layernorm_kernel(%arg0: i32, %arg1: memref<16x128xf32, #tpu.memory_space<vmem>>, %arg2: memref<1x128xf32, #tpu.memory_space<vmem>>, %arg3: memref<1x128xf32, #tpu.memory_space<vmem>>, %arg4: memref<16x128xf32, #tpu.memory_space<vmem>>) attributes {dimension_semantics = [#tpu.dimension_semantics<parallel>], iteration_bounds = array<i64: 2>, scalar_prefetch = 0 : i64, scratch_operands = 0 : i64, tpu.core_type = #tpu.core_type<tc>, window_params = [{transform_indices = @transform_0, window_bounds = array<i64: 16, 128>}, {pipeline_mode = #tpu.pipeline_mode<synchronous>, transform_indices = @transform_1, window_bounds = array<i64: 1, 128>}, {pipeline_mode = #tpu.pipeline_mode<synchronous>, transform_indices = @transform_2, window_bounds = array<i64: 1, 128>}, {transform_indices = @transform_3, window_bounds = array<i64: 16, 128>}]} {
    %c0 = arith.constant 0 : index
    %c0_0 = arith.constant 0 : index
    %0 = vector.load %arg1[%c0, %c0_0] : memref<16x128xf32, #tpu.memory_space<vmem>>, vector<16x128xf32>
    %cst = arith.constant dense<0.000000e+00> : vector<16xf32>
    %1 = vector.multi_reduction <add>, %0, %cst [1] : vector<16x128xf32> to vector<16xf32>
    %2 = vector.shape_cast %1 : vector<16xf32> to vector<16x1xf32>
    %cst_1 = arith.constant 1.280000e+02 : f32
    %3 = vector.broadcast %cst_1 : f32 to vector<16x1xf32>
    %4 = arith.divf %2, %3 : vector<16x1xf32>
    %5 = vector.broadcast %4 : vector<16x1xf32> to vector<16x128xf32>
    %6 = arith.subf %0, %5 : vector<16x128xf32>
    %7 = arith.mulf %6, %6 : vector<16x128xf32>
    %cst_2 = arith.constant dense<0.000000e+00> : vector<16xf32>
    %8 = vector.multi_reduction <add>, %7, %cst_2 [1] : vector<16x128xf32> to vector<16xf32>
    %9 = vector.shape_cast %8 : vector<16xf32> to vector<16x1xf32>
    %cst_3 = arith.constant 1.280000e+02 : f32
    %10 = vector.broadcast %cst_3 : f32 to vector<16x1xf32>
    %11 = arith.divf %9, %10 : vector<16x1xf32>
    %cst_4 = arith.constant 9.99999974E-6 : f32
    %12 = vector.broadcast %cst_4 : f32 to vector<16x1xf32>
    %13 = arith.addf %11, %12 : vector<16x1xf32>
    %14 = math.rsqrt %13 : vector<16x1xf32>
    %15 = vector.broadcast %14 : vector<16x1xf32> to vector<16x128xf32>
    %16 = arith.mulf %6, %15 : vector<16x128xf32>
    %c0_5 = arith.constant 0 : index
    %c0_6 = arith.constant 0 : index
    %17 = vector.load %arg2[%c0_5, %c0_6] : memref<1x128xf32, #tpu.memory_space<vmem>>, vector<1x128xf32>
    %18 = vector.broadcast %17 : vector<1x128xf32> to vector<16x128xf32>
    %19 = arith.mulf %16, %18 : vector<16x128xf32>
    %c0_7 = arith.constant 0 : index
    %c0_8 = arith.constant 0 : index
    %20 = vector.load %arg3[%c0_7, %c0_8] : memref<1x128xf32, #tpu.memory_space<vmem>>, vector<1x128xf32>
    %21 = vector.broadcast %20 : vector<1x128xf32> to vector<16x128xf32>
    %22 = arith.addf %19, %21 : vector<16x128xf32>
    %c0_9 = arith.constant 0 : index
    %c0_10 = arith.constant 0 : index
    %23 = vector.load %arg4[%c0_9, %c0_10] : memref<16x128xf32, #tpu.memory_space<vmem>>, vector<16x128xf32>
    tpu.vector_store %arg4[%c0_9, %c0_10], %22 {strides = array<i32>} : memref<16x128xf32, #tpu.memory_space<vmem>>, vector<16x128xf32>,
    return
  }
  func.func @transform_0(%arg0: i32) -> (i32, i32) {
    %c0_i32 = arith.constant 0 : i32
    %c0_i32_0 = arith.constant 0 : i32
    return %arg0, %c0_i32 : i32, i32
  }
  func.func @transform_1(%arg0: i32) -> (i32, i32) {
    %c0_i32 = arith.constant 0 : i32
    %c0_i32_0 = arith.constant 0 : i32
    %c0_i32_1 = arith.constant 0 : i32
    return %c0_i32, %c0_i32_0 : i32, i32
  }
  func.func @transform_2(%arg0: i32) -> (i32, i32) {
    %c0_i32 = arith.constant 0 : i32
    %c0_i32_0 = arith.constant 0 : i32
    %c0_i32_1 = arith.constant 0 : i32
    return %c0_i32, %c0_i32_0 : i32, i32
  }
  func.func @transform_3(%arg0: i32) -> (i32, i32) {
    %c0_i32 = arith.constant 0 : i32
    %c0_i32_0 = arith.constant 0 : i32
    return %arg0, %c0_i32 : i32, i32
  }
}

</mosaic_0001>

<llo_original>
// kernel: tpu_custom_call.1
$region0: #{tpu_custom_call.1}
  #allocation0 [shape = 'u32[]', space=smem, size = 0x4, offset = 0x4, fixed_abs, tag = 'smem constant byte address 0x4 - core index']
  #allocation1 [shape = 'u32[72,128]{1,0:T(1,128)}', space=vmem, size = 0x9000, scoped, tag = 'internal scratch']
  %s0 = inlined_call_operand.hbm [shape: f32[32,128], index: 0, kind: input, shape index: {}]
  %s1 = inlined_call_operand.hbm [shape: f32[1,128], index: 1, kind: input, shape index: {}]
  %s2 = inlined_call_operand.vmem [shape: f32[1,128], index: 2, kind: input, shape index: {}]
  %s3 = inlined_call_operand.hbm [shape: f32[32,128], index: 3, kind: output, shape index: {}]
  %s4 = sld [smem:[#allocation0]]
  $region53: #{tpu_custom_call.1} parent=0
    _
  %s6 = ssub.s32 1, %s4
  %s7 = scalar_select 0, %s6, %s4
  $region1: #{tpu_custom_call.1} parent=0
    #allocation2 [shape = 'u8[16384]{0}', space=vmem, size = 0x4000, scoped, tag = 'input window, operand 0']
    #allocation3 [shape = 's32[2]{0}', space=sflag, size = 0x8, scoped, tag = 'scoped memory for tpu_custom_call.1']
    #allocation4 [shape = 's32[2]{0}', space=sflag, size = 0x8, scoped, tag = 'scoped memory for tpu_custom_call.1']
    #allocation5 [shape = 'u8[512]{0}', space=vmem, size = 0x400, scoped, tag = 'input window, operand 1, single buffered']
    #allocation6 [shape = 's32[1]{0}', space=sflag, size = 0x4, scoped, tag = 'scoped memory for tpu_custom_call.1']
    #allocation7 [shape = 'u8[16384]{0}', space=vmem, size = 0x4000, scoped, tag = 'output window, operand 0']
    %8 = vsyncpa [#allocation3], 0
    %s9 = scalar_lea.sflag [#allocation3], 1
    %10 = vsyncpa %s9, 0
    %11 = vsyncpa [#allocation6], 0
    %12 = vsyncpa [#allocation4], 0
    %s13 = scalar_lea.sflag [#allocation4], 1
    %14 = vsyncpa %s13, 0
    loop: start=0, step=1, limit=4
    $region2: #{tpu_custom_call.1} parent=1 // loop_pre_header
      _
    $region3: #{tpu_custom_call.1} parent=1 // loop_header
      %s16 = sphi 0, %s20
      %p17 = scmp.ge.s32.totalorder %s16, 4
      %s26 = sphi 0, %s28
      %s29 = sphi 0, %s26
      %s30 = sphi 0, %s29
      %s46 = sphi 0, %s30
      %s50 = sphi 0, %s50
      %s52 = sphi 0, %s50
      %s53 = sphi 0, %s52
      %s67 = sphi 0, %s53
      %s71 = sphi 0, %s71
      %s73 = sphi 0, %s71
      %s74 = sphi 0, %s73
      %s88 = sphi 0, %s74
      %s94 = sphi 0, %s96
      %s97 = sphi 0, %s94
      %s98 = sphi 0, %s97
      %s114 = sphi 0, %s98
    $region4: #{tpu_custom_call.1} parent=1 // loop_header_branch
      %19 = sbr.rel (%p17) target = $region8
    $region5: #{tpu_custom_call.1} parent=1 // loop_body
      %s21 = ssub.s32 %s16, 1
      %s22 = ssub.s32 %s16, 2
      %s23 = sadd.s32 %s16, 1
      %s24 = ssub.s32 %s16, %s23
      %p25 = scmp.eq.s32.totalorder %s24, 0
      %s27 = sadd.s32 %s26, 1
      %s28 = scalar_select %p25, %s26, %s27
      %p31 = pneg %p25
      %p32 = scmp.eq.s32.totalorder %s16, 1
      %p33 = por %p31, %p32
      %p34 = scmp.ne.s32.totalorder %s26, %s29
      %p35 = scmp.eq.s32.totalorder %s16, 0
      %p36 = por %p34, %p35
      %p37 = scmp.ne.s32.totalorder %s26, %s29
      %p38 = scmp.eq.s32.totalorder %s21, 1
      %p39 = por %p37, %p38
      %p40 = scmp.ne.s32.totalorder %s29, %s30
      %p41 = scmp.eq.s32.totalorder %s21, 0
      %p42 = por %p40, %p41
      %p43 = scmp.ne.s32.totalorder %s29, %s30
      %p44 = scmp.eq.s32.totalorder %s22, 1
      %p45 = por %p43, %p44
      %p47 = scmp.ne.s32.totalorder %s30, %s46
      %p48 = scmp.eq.s32.totalorder %s22, 0
      %p49 = por %p47, %p48
      %s51 = sadd.s32 %s50, 1
      %p54 = scmp.eq.s32.totalorder %s16, 1
      %p55 = scmp.ne.s32.totalorder %s50, %s52
      %p56 = scmp.eq.s32.totalorder %s16, 0
      %p57 = por %p55, %p56
      %p58 = scmp.ne.s32.totalorder %s50, %s52
      %p59 = scmp.eq.s32.totalorder %s21, 1
      %p60 = por %p58, %p59
      %p61 = scmp.ne.s32.totalorder %s52, %s53
      %p62 = scmp.eq.s32.totalorder %s21, 0
      %p63 = por %p61, %p62
      %p64 = scmp.ne.s32.totalorder %s52, %s53
      %p65 = scmp.eq.s32.totalorder %s22, 1
      %p66 = por %p64, %p65
      %p68 = scmp.ne.s32.totalorder %s53, %s67
      %p69 = scmp.eq.s32.totalorder %s22, 0
      %p70 = por %p68, %p69
      %s72 = sadd.s32 %s71, 1
      %p75 = scmp.eq.s32.totalorder %s16, 1
      %p76 = scmp.ne.s32.totalorder %s71, %s73
      %p77 = scmp.eq.s32.totalorder %s16, 0
      %p78 = por %p76, %p77
      %p79 = scmp.ne.s32.totalorder %s71, %s73
      %p80 = scmp.eq.s32.totalorder %s21, 1
      %p81 = por %p79, %p80
      %p82 = scmp.ne.s32.totalorder %s73, %s74
      %p83 = scmp.eq.s32.totalorder %s21, 0
      %p84 = por %p82, %p83
      %p85 = scmp.ne.s32.totalorder %s73, %s74
      %p86 = scmp.eq.s32.totalorder %s22, 1
      %p87 = por %p85, %p86
      %p89 = scmp.ne.s32.totalorder %s74, %s88
      %p90 = scmp.eq.s32.totalorder %s22, 0
      %p91 = por %p89, %p90
      %s92 = ssub.s32 %s16, %s23
      %p93 = scmp.eq.s32.totalorder %s92, 0
      %s95 = sadd.s32 %s94, 1
      %s96 = scalar_select %p93, %s94, %s95
      %p99 = pneg %p93
      %p100 = scmp.eq.s32.totalorder %s16, 1
      %p101 = por %p99, %p100
      %p102 = scmp.ne.s32.totalorder %s94, %s97
      %p103 = scmp.eq.s32.totalorder %s16, 0
      %p104 = por %p102, %p103
      %p105 = scmp.ne.s32.totalorder %s94, %s97
      %p106 = scmp.eq.s32.totalorder %s21, 1
      %p107 = por %p105, %p106
      %p108 = scmp.ne.s32.totalorder %s97, %s98
      %p109 = scmp.eq.s32.totalorder %s21, 0
      %p110 = por %p108, %p109
      %p111 = scmp.ne.s32.totalorder %s97, %s98
      %p112 = scmp.eq.s32.totalorder %s22, 1
      %p113 = por %p111, %p112
      %p115 = scmp.ne.s32.totalorder %s98, %s114
      %p116 = scmp.eq.s32.totalorder %s22, 0
      %p117 = por %p115, %p116
      %p118 = scmp.le.s32.totalorder 1, %s16
      %p119 = scmp.lt.s32.totalorder %s16, 3
      %p120 = pnand %p118, %p119
      %p121 = pneg %p120
      // Predicated region
      $region9: #{tpu_custom_call.1} parent=5 // pred_check
        _
      $region10: #{tpu_custom_call.1} parent=5 // pred_check_branch
        %123 = sbr.rel (%p120) target = $region12
      $region11: #{tpu_custom_call.1} parent=5 // pred_region
        %s124 = ssub.s32 %s16, 1
        // Predicated region
        $region13: #{tpu_custom_call.1} parent=11 // pred_check
          %p125 = pneg %p63
        $region14: #{tpu_custom_call.1} parent=11 // pred_check_branch
          %127 = sbr.rel (%p125) target = $region16
        $region15: #{tpu_custom_call.1} parent=11 // pred_region
          %129 = vsyncadd [#allocation6], 0
          %s131 = sshll.u32 %s1, 4
          %s132 = int_to_ptr.hbm [resolvable:$true] %s131
          %s133 = sshll.u32 [#allocation5], 4
          %s134 = int_to_ptr.vmem [resolvable:$true] %s133
          %136 = dma.hbm_to_vmem [thread:$0]  %s132, 16, %s134, [#allocation6]
        $region16: #{tpu_custom_call.1} parent=11 // pred_fallthru
          _
        // Predicated region
        $region17: #{tpu_custom_call.1} parent=11 // pred_check
          %p137 = pneg %p84
        $region18: #{tpu_custom_call.1} parent=11 // pred_check_branch
          %139 = sbr.rel (%p137) target = $region20
        $region19: #{tpu_custom_call.1} parent=11 // pred_region
          _
        $region20: #{tpu_custom_call.1} parent=11 // pred_fallthru
          _
      $region12: #{tpu_custom_call.1} parent=5 // pred_fallthru
        _
      %p140 = scmp.lt.s32.totalorder %s16, 2
      // Predicated region
      $region21: #{tpu_custom_call.1} parent=5 // pred_check
        %p141 = pneg %p140
      $region22: #{tpu_custom_call.1} parent=5 // pred_check_branch
        %143 = sbr.rel (%p141) target = $region24
      $region23: #{tpu_custom_call.1} parent=5 // pred_region
        // Predicated region
        $region25: #{tpu_custom_call.1} parent=23 // pred_check
          %p144 = pneg %p36
        $region26: #{tpu_custom_call.1} parent=23 // pred_check_branch
          %146 = sbr.rel (%p144) target = $region28
        $region27: #{tpu_custom_call.1} parent=23 // pred_region
          %s147 = sand.u32 %s26, 1
          %s148 = scalar_lea.sflag [#allocation3], %s147
          %s149 = sand.u32 %s26, 1
          %s150 = smul.addr %s149, 16
          %s151 = scalar_lea.vmem [#allocation2], %s150
          %s152 = smul.u32 2, %s16
          %154 = vsyncadd %s148, 0
          %s155 = smul.addr %s152, 8
          %s156 = scalar_lea.hbm %s0, %s155
          %s157 = sshll.u32 %s156, 4
          %s158 = int_to_ptr.hbm [resolvable:$true] %s157
          %s159 = sshll.u32 %s151, 4
          %s160 = int_to_ptr.vmem [resolvable:$true] %s159
          %165 = dma.hbm_to_vmem [thread:$0]  %s158, 256, %s160, %s148, 128, 128, 8
        $region28: #{tpu_custom_call.1} parent=23 // pred_fallthru
          _
      $region24: #{tpu_custom_call.1} parent=5 // pred_fallthru
        _
      %p166 = scmp.le.s32.totalorder 1, %s16
      %p167 = scmp.lt.s32.totalorder %s16, 3
      %p168 = pnand %p166, %p167
      %p169 = pneg %p168
      // Predicated region
      $region29: #{tpu_custom_call.1} parent=5 // pred_check
        _
      $region30: #{tpu_custom_call.1} parent=5 // pred_check_branch
        %171 = sbr.rel (%p168) target = $region32
      $region31: #{tpu_custom_call.1} parent=5 // pred_region
        %s172 = ssub.s32 %s16, 1
        %s173 = sand.u32 %s29, 1
        %s174 = scalar_lea.sflag [#allocation3], %s173
        %s175 = sand.u32 %s29, 1
        %s176 = smul.addr %s175, 16
        %s177 = scalar_lea.vmem [#allocation2], %s176
        // Predicated region
        $region33: #{tpu_custom_call.1} parent=31 // pred_check
          %p178 = pneg %p42
        $region34: #{tpu_custom_call.1} parent=31 // pred_check_branch
          %180 = sbr.rel (%p178) target = $region36
        $region35: #{tpu_custom_call.1} parent=31 // pred_region
          %182 = dma.done %s174, 256
        $region36: #{tpu_custom_call.1} parent=31 // pred_fallthru
          _
        // Predicated region
        $region37: #{tpu_custom_call.1} parent=31 // pred_check
          %p183 = pneg %p63
        $region38: #{tpu_custom_call.1} parent=31 // pred_check_branch
          %185 = sbr.rel (%p183) target = $region40
        $region39: #{tpu_custom_call.1} parent=31 // pred_region
          %187 = dma.done [#allocation6], 16
        $region40: #{tpu_custom_call.1} parent=31 // pred_fallthru
          _
        %s188 = sand.u32 %s29, 1
        %s189 = scalar_lea.sflag [#allocation3], %s188
        %s190 = sand.u32 %s29, 1
        %s191 = smul.addr %s190, 16
        %s192 = scalar_lea.vmem [#allocation2], %s191
        %p193 = pneg %p42
        %p194 = pneg %p39
        %p195 = pneg %p63
        %p196 = pneg %p60
        %p197 = pneg %p84
        %p198 = pneg %p81
        %p199 = pneg %p110
        %p200 = pneg %p107
        %s201 = sand.u32 %s97, 1
        %s202 = scalar_lea.sflag [#allocation4], %s201
        %s203 = sand.u32 %s97, 1
        %s204 = smul.addr %s203, 16
        %s205 = scalar_lea.vmem [#allocation7], %s204
        %s206 = smul.u32 2, %s21
        %s207 = smul.u32 2, %s21
        %v208 = vld [vmem:[%s177] sm:$0xff]
        %v209 = vld [vmem:[%s177 + $0x8] sm:$0xff]
        %210 = vadd.xlane.f32.xlu0 %v208
        %v211 = vpop.xlane.xlu0 %210
        %212 = vadd.xlane.f32.xlu0 %v209
        %v213 = vpop.xlane.xlu0 %212
        %v214 = vrcp.pop 128.0
        %v215 = vmul.f32 128.0, %v214
        %v216 = vsub.f32 1.0, %v215
        %v217 = vmul.f32 %v214, %v216
        %v218 = vadd.f32 %v214, %v217
        %vm219 = vweird.f32 %v214
        %v220 = vsel %vm219, %v214, %v218
        %v221 = vmul.f32 %v211, %v220
        %v222 = vmul.f32 %v213, %v220
        %v223 = vsub.f32 %v208, %v221
        %v224 = vsub.f32 %v209, %v222
        %v225 = vmul.f32 %v223, %v223
        %v226 = vmul.f32 %v224, %v224
        %227 = vadd.xlane.f32.xlu0 %v225
        %v228 = vpop.xlane.xlu0 %227
        %229 = vadd.xlane.f32.xlu0 %v226
        %v230 = vpop.xlane.xlu0 %229
        %v231 = vmul.f32 %v228, %v220
        %v232 = vmul.f32 %v230, %v220
        %v233 = vadd.f32 %v231, 1e-05
        %v234 = vadd.f32 %v232, 1e-05
        %v235 = vrsqrt.pop %v233
        %v236 = vmul.f32 %v235, %v233
        %v237 = vmul.f32 %v236, %v235
        %v238 = vmul.f32 0.5, %v237
        %v239 = vsub.f32 1.5, %v238
        %v240 = vmul.f32 %v235, %v239
        %vm241 = vweird.f32 %v233
        %vm242 = vweird.f32 %v235
        %vm243 = vmor %vm241, %vm242
        %v244 = vsel %vm243, %v235, %v240
        %v245 = vrsqrt.pop %v234
        %v246 = vmul.f32 %v245, %v234
        %v247 = vmul.f32 %v246, %v245
        %v248 = vmul.f32 0.5, %v247
        %v249 = vsub.f32 1.5, %v248
        %v250 = vmul.f32 %v245, %v249
        %vm251 = vweird.f32 %v234
        %vm252 = vweird.f32 %v245
        %vm253 = vmor %vm251, %vm252
        %v254 = vsel %vm253, %v245, %v250
        %v255 = vmul.f32 %v223, %v244
        %v256 = vmul.f32 %v224, %v254
        %v257 = vld [vmem:[#allocation5] sm:$0x1]
        %v259 = vperm.slane %v257, 0
        %v261 = vmul.f32 %v255, %v259
        %v262 = vmul.f32 %v256, %v259
        %v263 = vld [vmem:[%s2] sm:$0x1]
        %v265 = vperm.slane %v263, 0
        %v267 = vadd.f32 %v261, %v265
        %v268 = vadd.f32 %v262, %v265
        %269 = vst [vmem:[%s205] sm:$0xff] %v267
        %270 = vst [vmem:[%s205 + $0x8] sm:$0xff] %v268
        %s271 = sand.u32 %s97, 1
        %s272 = scalar_lea.sflag [#allocation4], %s271
        %s273 = sand.u32 %s97, 1
        %s274 = smul.addr %s273, 16
        %s275 = scalar_lea.vmem [#allocation7], %s274
        // Predicated region
        $region41: #{tpu_custom_call.1} parent=31 // pred_check
          %p276 = pneg %p107
        $region42: #{tpu_custom_call.1} parent=31 // pred_check_branch
          %278 = sbr.rel (%p276) target = $region44
        $region43: #{tpu_custom_call.1} parent=31 // pred_region
          %s279 = smul.u32 2, %s21
          %281 = vsyncadd %s272, 0
          %s282 = smul.addr %s279, 8
          %s283 = scalar_lea.hbm %s3, %s282
          %s284 = sshll.u32 %s275, 4
          %s285 = int_to_ptr.vmem [resolvable:$true] %s284
          %s286 = sshll.u32 %s283, 4
          %s287 = int_to_ptr.hbm [resolvable:$true] %s286
          %292 = dma.vmem_to_hbm [thread:$0]  %s285, 256, %s287, %s272, 128, 128, 8
        $region44: #{tpu_custom_call.1} parent=31 // pred_fallthru
          _
      $region32: #{tpu_custom_call.1} parent=5 // pred_fallthru
        _
      %p293 = scmp.le.s32.totalorder 2, %s16
      // Predicated region
      $region45: #{tpu_custom_call.1} parent=5 // pred_check
        %p294 = pneg %p293
      $region46: #{tpu_custom_call.1} parent=5 // pred_check_branch
        %296 = sbr.rel (%p294) target = $region48
      $region47: #{tpu_custom_call.1} parent=5 // pred_region
        %s297 = ssub.s32 %s16, 2
        // Predicated region
        $region49: #{tpu_custom_call.1} parent=47 // pred_check
          %p298 = pneg %p113
        $region50: #{tpu_custom_call.1} parent=47 // pred_check_branch
          %300 = sbr.rel (%p298) target = $region52
        $region51: #{tpu_custom_call.1} parent=47 // pred_region
          %s301 = sand.u32 %s98, 1
          %s302 = scalar_lea.sflag [#allocation4], %s301
          %s303 = sand.u32 %s98, 1
          %s304 = smul.addr %s303, 16
          %s305 = scalar_lea.vmem [#allocation7], %s304
          %307 = dma.done %s302, 256
        $region52: #{tpu_custom_call.1} parent=47 // pred_fallthru
          _
      $region48: #{tpu_custom_call.1} parent=5 // pred_fallthru
        _
    $region6: #{tpu_custom_call.1} parent=1 // loop_footer
      %s20 = sadd.s32 1, %s16
    $region7: #{tpu_custom_call.1} parent=1 // loop_footer_branch
      %15 = sbr.rel target = $region3
    $region8: #{tpu_custom_call.1} parent=1 // loop_exit
      _
    %308 = vsyncpa [#allocation3], 1
    %s309 = scalar_lea.sflag [#allocation3], 1
    %310 = vsyncpa %s309, 1
    %311 = vsyncpa [#allocation6], 1
    %312 = vsyncpa [#allocation4], 1
    %s313 = scalar_lea.sflag [#allocation4], 1
    %314 = vsyncpa %s313, 1

</llo_original>
